<compile_context>
chip_gen: v5e
topology: v5e:2x2
jax: 0.10.0
libtpu: 0.0.40
codegen_flags: <defaults>
</compile_context>

<pallas_src>
import functools

import jax
import jax.numpy as jnp
from jax.experimental import pallas as pl
from jax.experimental.pallas import tpu as pltpu

LANE = 128
TARGET_BLOCK_BYTES = 2 * 1024 * 1024   # ~2 MiB/block: >=85% HBM roofline, VMEM-safe
VMEM_LIMIT_BYTES = 32 * 1024 * 1024    # in+out double-buffered blocks + headroom
# TODO(synk): make TARGET_BLOCK_BYTES generation-aware via pltpu.get_tpu_info()
# (v7x benefits from ~4 MiB blocks; v5e prefers <=3 MiB at its scoped default).

_GOLDEN = -1640531527                  # 0x9E3779B9 as a wrapped int32 (seed mixer)


# --------------------------------------------------------------------------- #
# Counter-based PRNG (plain jnp ops: lowers on Mosaic TPU and in interpret).   #
# --------------------------------------------------------------------------- #
def _mix32(x_u32):
    """32-bit avalanche finalizer (splitmix32/murmur3-style, low bias)."""
    x = x_u32
    x = x ^ (x >> 16)
    x = x * jnp.uint32(0x7FEB352D)
    x = x ^ (x >> 15)
    x = x * jnp.uint32(0x846CA68B)
    x = x ^ (x >> 16)
    return x


def _uniform_from_index(idx_i32, seed_i32):
    """hash(global element index, seed) -> uniform float32 in [0, 1) (24-bit)."""
    mixed = idx_i32 ^ (seed_i32 * _GOLDEN)                        # wraps like u32
    h = _mix32(jax.lax.bitcast_convert_type(mixed, jnp.uint32))
    bits24 = jax.lax.bitcast_convert_type(h >> 8, jnp.int32)      # in [0, 2**24)
    return bits24.astype(jnp.float32) * jnp.float32(1.0 / (1 << 24))


def _bernoulli_from_logits(x_f32, u_f32):
    """Bernoulli(sigmoid(x)): u < 1/(1+e^-x)  <=>  u*(1+e^-x) < 1 (no reciprocal)."""
    return u_f32 * (jnp.exp(-x_f32) + jnp.float32(1.0)) < jnp.float32(1.0)


def _round_sigmoid(x_f32):
    """round-half-even(sigmoid(x)): 1 iff p>0.5, p==0.5 -> 0, NaN propagates."""
    p = jnp.float32(1.0) / (jnp.float32(1.0) + jnp.exp(-x_f32))
    return jnp.where(p > jnp.float32(0.5), jnp.float32(1.0), p * jnp.float32(0.0))


# --------------------------------------------------------------------------- #
# Kernels                                                                      #
# --------------------------------------------------------------------------- #
def _ste_stochastic_kernel(seed_ref, x_ref, o_ref, *, slope):
    rows, lanes = x_ref.shape
    x = x_ref[...].astype(jnp.float32)
    if slope != 1.0:                    # static: skip the multiply when slope == 1
        x = x * jnp.float32(slope)
    # Global element index of every lane in this block drives the counter PRNG.
    row = jax.lax.broadcasted_iota(jnp.int32, (rows, lanes), 0)
    lane = jax.lax.broadcasted_iota(jnp.int32, (rows, lanes), 1)
    base = pl.program_id(0) * (rows * lanes)
    idx = base + row * lanes + lane
    u = _uniform_from_index(idx, seed_ref[0])
    o_ref[...] = _bernoulli_from_logits(x, u).astype(o_ref.dtype)


def _ste_deterministic_kernel(x_ref, o_ref):
    o_ref[...] = _round_sigmoid(x_ref[...].astype(jnp.float32)).astype(o_ref.dtype)


# --------------------------------------------------------------------------- #
# Pure-jnp path: tiny tensors and ragged tails (bit-compatible with the kernel)#
# --------------------------------------------------------------------------- #
def _jnp_forward(flat, start_index, *, stochastic, slope, seed):
    x = flat.astype(jnp.float32)
    if not stochastic:
        return _round_sigmoid(x).astype(flat.dtype)
    if slope != 1.0:
        x = x * jnp.float32(slope)
    start = ((int(start_index) + 2**31) % 2**32) - 2**31          # wrap into int32
    idx = jnp.int32(start) + jnp.arange(flat.shape[0], dtype=jnp.int32)
    u = _uniform_from_index(idx, jnp.asarray(seed, dtype=jnp.int32))
    return _bernoulli_from_logits(x, u).astype(flat.dtype)


def _sublane(dtype):
    return {4: 8, 2: 16, 1: 32}.get(jnp.dtype(dtype).itemsize, 8)


# --------------------------------------------------------------------------- #
# Wrapper                                                                      #
# --------------------------------------------------------------------------- #
def straight_through_estimator(policy, *, stochastic=True, slope=1.0, seed=0,
                               min_pallas_elements=0):
    """Pallas TPU forward of StraightThroughEstimator.

    policy: any-shape float array (e.g. NCHW).  Returns {0.0, 1.0}, same
    shape/dtype.  Raise `min_pallas_elements` (~128*1024) in production so tiny
    tensors take a single fused XLA pass instead of a pallas_call launch; it
    defaults to 0 here so the Pallas kernel is always exercised.
    """
    orig_shape = policy.shape
    dtype = policy.dtype
    slope = float(slope)
    seed = ((int(seed) + 2**31) % 2**32) - 2**31                  # wrap into int32

    flat = policy.reshape(-1)
    total = int(flat.shape[0])

    sublane = _sublane(dtype)
    chunk = sublane * LANE
    aligned = (total // chunk) * chunk

    # Tensors smaller than one packed tile (or below the opt-in threshold):
    # one fused XLA pass is strictly cheaper than a pallas_call.
    if aligned == 0 or total < min_pallas_elements:
        return _jnp_forward(flat, 0, stochastic=stochastic, slope=slope,
                            seed=seed).reshape(orig_shape)

    head = flat if aligned == total else flat[:aligned]
    rows = aligned // LANE                                        # multiple of sublane
    x2d = head.reshape(rows, LANE)

    # ~2 MiB blocks, rounded to the dtype's packed sublane multiple.
    itemsize = jnp.dtype(dtype).itemsize
    max_tile_rows = max(sublane,
                        (TARGET_BLOCK_BYTES // (LANE * itemsize)) // sublane * sublane)
    tile_rows = min(max_tile_rows, rows)
    # Guarantee >= 2 grid steps when possible so the "parallel" grid axis can
    # shard across both TensorCores on v7x (no effect on single-TC v5e/v6e).
    if tile_rows == rows and rows >= 2 * sublane:
        tile_rows = ((rows // 2) // sublane) * sublane
    grid = (pl.cdiv(rows, tile_rows),)

    out_shape = jax.ShapeDtypeStruct((rows, LANE), dtype)
    compiler_params = pltpu.CompilerParams(
        dimension_semantics=("parallel",),
        vmem_limit_bytes=VMEM_LIMIT_BYTES,
    )

    if stochastic:
        kernel = functools.partial(_ste_stochastic_kernel, slope=slope)
        seed_arr = jnp.asarray([seed], dtype=jnp.int32)
        # index_maps receive the scalar-prefetch ref as a trailing positional arg.
        block = pl.BlockSpec((tile_rows, LANE), lambda i, seed_ref: (i, 0))
        out2d = pl.pallas_call(
            kernel,
            out_shape=out_shape,
            grid_spec=pltpu.PrefetchScalarGridSpec(
                num_scalar_prefetch=1,
                grid=grid,
                in_specs=[block],
                out_specs=block,
            ),
            compiler_params=compiler_params,
        )(seed_arr, x2d)
    else:
        block = pl.BlockSpec((tile_rows, LANE), lambda i: (i, 0))
        out2d = pl.pallas_call(
            _ste_deterministic_kernel,
            out_shape=out_shape,
            grid=grid,
            in_specs=[block],
            out_specs=block,
            compiler_params=compiler_params,
        )(x2d)

    out_head = out2d.reshape(-1)
    if aligned == total:
        return out_head.reshape(orig_shape)
    # Ragged tail (< sublane*128 elements): same hash in plain jnp — avoids a
    # pad + slice round trip over the whole tensor.
    tail = _jnp_forward(flat[aligned:], aligned, stochastic=stochastic,
                        slope=slope, seed=seed)
    return jnp.concatenate([out_head, tail]).reshape(orig_shape)


if __name__ == "__main__":
    key = jax.random.PRNGKey(0)
    # Small NCHW "policy" tensor consistent with a conv-style module input.
    x = jax.random.normal(key, (2, 4, 16, 16), dtype=jnp.float32)

    # Stochastic path (Bernoulli straight-through forward).
    y_stoch = straight_through_estimator(x, stochastic=True, slope=1.0, seed=42)
    y_stoch = jax.block_until_ready(y_stoch)

    # Deterministic path (round(sigmoid(x))).
    y_det = straight_through_estimator(x, stochastic=False)
    y_det = jax.block_until_ready(y_det)

    # Basic sanity checks.
    assert y_stoch.shape == x.shape and y_det.shape == x.shape
    assert y_stoch.dtype == x.dtype and y_det.dtype == x.dtype
    assert bool(jnp.all((y_stoch == 0.0) | (y_stoch == 1.0)))
    assert bool(jnp.all(y_det == jnp.round(jax.nn.sigmoid(x))))

    # The Pallas stochastic path must agree with the pure-jnp counter-PRNG
    # reference (same hash, same indexing); allow a tiny budget for possible
    # last-ulp differences between the Mosaic and XLA exp().
    ref = _jnp_forward(x.reshape(-1), 0, stochastic=True, slope=1.0,
                       seed=42).reshape(x.shape)
    mismatch = float(jnp.mean((y_stoch != ref).astype(jnp.float32)))
    assert mismatch <= 0.01, mismatch

    # Sample mean should be near E[sigmoid(N(0,1))] = 0.5.
    mean = float(jnp.mean(y_stoch))
    assert 0.35 < mean < 0.65, mean

    print("KERNEL_OK")
</pallas_src>

<mosaic_0001>
module attributes {stable_mosaic.version = 11 : i64} {
  func.func @_ste_stochastic_kernel(%arg0: i32, %arg1: memref<1xi32, #tpu.memory_space<smem>>, %arg2: memref<8x128xf32, #tpu.memory_space<vmem>>, %arg3: memref<8x128xf32, #tpu.memory_space<vmem>>) attributes {dimension_semantics = [#tpu.dimension_semantics<parallel>], iteration_bounds = array<i64: 2>, scalar_prefetch = 1 : i64, scratch_operands = 0 : i64, tpu.core_type = #tpu.core_type<tc>, window_params = [{transform_indices = @transform_0, window_bounds = array<i64: 8, 128>}, {transform_indices = @transform_1, window_bounds = array<i64: 8, 128>}]} {
    %c0 = arith.constant 0 : index
    %c0_0 = arith.constant 0 : index
    %0 = vector.load %arg2[%c0, %c0_0] : memref<8x128xf32, #tpu.memory_space<vmem>>, vector<8x128xf32>
    %1 = tpu.iota {dimensions = array<i32: 0>} : vector<8x128xi32>
    %2 = tpu.iota {dimensions = array<i32: 1>} : vector<8x128xi32>
    %c1024_i32 = arith.constant 1024 : i32
    %3 = arith.muli %arg0, %c1024_i32 : i32
    %c128_i32 = arith.constant 128 : i32
    %4 = vector.broadcast %c128_i32 : i32 to vector<8x128xi32>
    %5 = arith.muli %1, %4 : vector<8x128xi32>
    %6 = vector.broadcast %3 : i32 to vector<8x128xi32>
    %7 = arith.addi %6, %5 : vector<8x128xi32>
    %8 = arith.addi %7, %2 : vector<8x128xi32>
    %c0_1 = arith.constant 0 : index
    %9 = memref.load %arg1[%c0_1] : memref<1xi32, #tpu.memory_space<smem>>
    %c-1640531527_i32 = arith.constant -1640531527 : i32
    %10 = arith.muli %9, %c-1640531527_i32 : i32
    %11 = vector.broadcast %10 : i32 to vector<8x128xi32>
    %12 = arith.xori %8, %11 : vector<8x128xi32>
    %13 = tpu.bitcast %12 : vector<8x128xi32> -> vector<8x128xi32>
    %c16_i32 = arith.constant 16 : i32
    %14 = vector.broadcast %c16_i32 : i32 to vector<8x128xi32>
    %15 = arith.shrui %13, %14 : vector<8x128xi32>
    %16 = arith.xori %13, %15 : vector<8x128xi32>
    %c2146121005_i32 = arith.constant 2146121005 : i32
    %17 = vector.broadcast %c2146121005_i32 : i32 to vector<8x128xi32>
    %18 = arith.muli %16, %17 : vector<8x128xi32>
    %c15_i32 = arith.constant 15 : i32
    %19 = vector.broadcast %c15_i32 : i32 to vector<8x128xi32>
    %20 = arith.shrui %18, %19 : vector<8x128xi32>
    %21 = arith.xori %18, %20 : vector<8x128xi32>
    %c-2073254261_i32 = arith.constant -2073254261 : i32
    %22 = vector.broadcast %c-2073254261_i32 : i32 to vector<8x128xi32>
    %23 = arith.muli %21, %22 : vector<8x128xi32>
    %c16_i32_2 = arith.constant 16 : i32
    %24 = vector.broadcast %c16_i32_2 : i32 to vector<8x128xi32>
    %25 = arith.shrui %23, %24 : vector<8x128xi32>
    %26 = arith.xori %23, %25 : vector<8x128xi32>
    %c8_i32 = arith.constant 8 : i32
    %27 = vector.broadcast %c8_i32 : i32 to vector<8x128xi32>
    %28 = arith.shrui %26, %27 : vector<8x128xi32>
    %29 = tpu.bitcast %28 : vector<8x128xi32> -> vector<8x128xi32>
    %30 = arith.sitofp %29 : vector<8x128xi32> to vector<8x128xf32>
    %cst = arith.constant 5.96046448E-8 : f32
    %31 = vector.broadcast %cst : f32 to vector<8x128xf32>
    %32 = arith.mulf %30, %31 : vector<8x128xf32>
    %cst_3 = arith.constant 0.000000e+00 : f32
    %33 = vector.broadcast %cst_3 : f32 to vector<8x128xf32>
    %34 = arith.subf %33, %0 : vector<8x128xf32>
    %35 = math.exp %34 : vector<8x128xf32>
    %cst_4 = arith.constant 1.000000e+00 : f32
    %36 = vector.broadcast %cst_4 : f32 to vector<8x128xf32>
    %37 = arith.addf %35, %36 : vector<8x128xf32>
    %38 = arith.mulf %32, %37 : vector<8x128xf32>
    %cst_5 = arith.constant 1.000000e+00 : f32
    %39 = vector.broadcast %cst_5 : f32 to vector<8x128xf32>
    %40 = arith.cmpf olt, %38, %39 : vector<8x128xf32>
    %41 = arith.extui %40 : vector<8x128xi1> to vector<8x128xi32>
    %42 = arith.sitofp %41 : vector<8x128xi32> to vector<8x128xf32>
    %c0_6 = arith.constant 0 : index
    %c0_7 = arith.constant 0 : index
    %43 = vector.load %arg3[%c0_6, %c0_7] : memref<8x128xf32, #tpu.memory_space<vmem>>, vector<8x128xf32>
    tpu.vector_store %arg3[%c0_6, %c0_7], %42 {strides = array<i32>} : memref<8x128xf32, #tpu.memory_space<vmem>>, vector<8x128xf32>,
    return
  }
  func.func @transform_0(%arg0: i32, %arg1: memref<1xi32, #tpu.memory_space<smem>>) -> (i32, i32) {
    %c0_i32 = arith.constant 0 : i32
    %c0_i32_0 = arith.constant 0 : i32
    return %arg0, %c0_i32 : i32, i32
  }
  func.func @transform_1(%arg0: i32, %arg1: memref<1xi32, #tpu.memory_space<smem>>) -> (i32, i32) {
    %c0_i32 = arith.constant 0 : i32
    %c0_i32_0 = arith.constant 0 : i32
    return %arg0, %c0_i32 : i32, i32
  }
}

</mosaic_0001>

<llo_original>
// kernel: tpu_custom_call.1
$region0: #{tpu_custom_call.1}
  #allocation0 [shape = 'u32[]', space=smem, size = 0x4, offset = 0x4, fixed_abs, tag = 'smem constant byte address 0x4 - core index']
  #allocation1 [shape = 'u32[72,128]{1,0:T(1,128)}', space=vmem, size = 0x9000, scoped, tag = 'internal scratch']
  #allocation2 [shape = 's32[1]{0}', space=sflag, size = 0x4, scoped, tag = 'scoped memory for tpu_custom_call.1']
  #allocation3 [shape = 's32[1]{0:T(128)S(6)}', space=smem, size = 0x200, scoped, tag = 'prefetched SMEM operand 0']
  %s0 = inlined_call_operand.<no memory space> [shape: s32[1], index: 0, kind: input, shape index: {}]
  %s1 = inlined_call_operand.hbm [shape: f32[16,128], index: 1, kind: input, shape index: {}]
  %s2 = inlined_call_operand.hbm [shape: f32[16,128], index: 2, kind: output, shape index: {}]
  %s3 = sld [smem:[#allocation0]]
  $region41: #{tpu_custom_call.1} parent=0
    _
  %s5 = ssub.s32 1, %s3
  %s6 = scalar_select 0, %s5, %s3
  %7 = sst [smem:[#allocation3]] %s0
  $region1: #{tpu_custom_call.1} parent=0
    #allocation4 [shape = 'u8[8192]{0}', space=vmem, size = 0x2000, scoped, tag = 'input window, operand 1']
    #allocation5 [shape = 's32[2]{0}', space=sflag, size = 0x8, scoped, tag = 'scoped memory for tpu_custom_call.1']
    #allocation6 [shape = 's32[2]{0}', space=sflag, size = 0x8, scoped, tag = 'scoped memory for tpu_custom_call.1']
    #allocation7 [shape = 'u8[8192]{0}', space=vmem, size = 0x2000, scoped, tag = 'output window, operand 0']
    %8 = vsyncpa [#allocation5], 0
    %s9 = scalar_lea.sflag [#allocation5], 1
    %10 = vsyncpa %s9, 0
    %11 = vsyncpa [#allocation6], 0
    %s12 = scalar_lea.sflag [#allocation6], 1
    %13 = vsyncpa %s12, 0
    loop: start=0, step=1, limit=4
    $region2: #{tpu_custom_call.1} parent=1 // loop_pre_header
      _
    $region3: #{tpu_custom_call.1} parent=1 // loop_header
      %s15 = sphi 0, %s19
      %p16 = scmp.ge.s32.totalorder %s15, 4
      %s25 = sphi 0, %s27
      %s28 = sphi 0, %s25
      %s29 = sphi 0, %s28
      %s45 = sphi 0, %s29
      %s51 = sphi 0, %s53
      %s54 = sphi 0, %s51
      %s55 = sphi 0, %s54
      %s71 = sphi 0, %s55
    $region4: #{tpu_custom_call.1} parent=1 // loop_header_branch
      %18 = sbr.rel (%p16) target = $region8
    $region5: #{tpu_custom_call.1} parent=1 // loop_body
      %s20 = ssub.s32 %s15, 1
      %s21 = ssub.s32 %s15, 2
      %s22 = sadd.s32 %s15, 1
      %s23 = ssub.s32 %s15, %s22
      %p24 = scmp.eq.s32.totalorder %s23, 0
      %s26 = sadd.s32 %s25, 1
      %s27 = scalar_select %p24, %s25, %s26
      %p30 = pneg %p24
      %p31 = scmp.eq.s32.totalorder %s15, 1
      %p32 = por %p30, %p31
      %p33 = scmp.ne.s32.totalorder %s25, %s28
      %p34 = scmp.eq.s32.totalorder %s15, 0
      %p35 = por %p33, %p34
      %p36 = scmp.ne.s32.totalorder %s25, %s28
      %p37 = scmp.eq.s32.totalorder %s20, 1
      %p38 = por %p36, %p37
      %p39 = scmp.ne.s32.totalorder %s28, %s29
      %p40 = scmp.eq.s32.totalorder %s20, 0
      %p41 = por %p39, %p40
      %p42 = scmp.ne.s32.totalorder %s28, %s29
      %p43 = scmp.eq.s32.totalorder %s21, 1
      %p44 = por %p42, %p43
      %p46 = scmp.ne.s32.totalorder %s29, %s45
      %p47 = scmp.eq.s32.totalorder %s21, 0
      %p48 = por %p46, %p47
      %s49 = ssub.s32 %s15, %s22
      %p50 = scmp.eq.s32.totalorder %s49, 0
      %s52 = sadd.s32 %s51, 1
      %s53 = scalar_select %p50, %s51, %s52
      %p56 = pneg %p50
      %p57 = scmp.eq.s32.totalorder %s15, 1
      %p58 = por %p56, %p57
      %p59 = scmp.ne.s32.totalorder %s51, %s54
      %p60 = scmp.eq.s32.totalorder %s15, 0
      %p61 = por %p59, %p60
      %p62 = scmp.ne.s32.totalorder %s51, %s54
      %p63 = scmp.eq.s32.totalorder %s20, 1
      %p64 = por %p62, %p63
      %p65 = scmp.ne.s32.totalorder %s54, %s55
      %p66 = scmp.eq.s32.totalorder %s20, 0
      %p67 = por %p65, %p66
      %p68 = scmp.ne.s32.totalorder %s54, %s55
      %p69 = scmp.eq.s32.totalorder %s21, 1
      %p70 = por %p68, %p69
      %p72 = scmp.ne.s32.totalorder %s55, %s71
      %p73 = scmp.eq.s32.totalorder %s21, 0
      %p74 = por %p72, %p73
      %p75 = scmp.le.s32.totalorder 1, %s15
      %p76 = scmp.lt.s32.totalorder %s15, 3
      %p77 = pnand %p75, %p76
      %p78 = pneg %p77
      // Predicated region
      $region9: #{tpu_custom_call.1} parent=5 // pred_check
        _
      $region10: #{tpu_custom_call.1} parent=5 // pred_check_branch
        %80 = sbr.rel (%p77) target = $region12
      $region11: #{tpu_custom_call.1} parent=5 // pred_region
        %s81 = ssub.s32 %s15, 1
      $region12: #{tpu_custom_call.1} parent=5 // pred_fallthru
        _
      %p82 = scmp.lt.s32.totalorder %s15, 2
      // Predicated region
      $region13: #{tpu_custom_call.1} parent=5 // pred_check
        %p83 = pneg %p82
      $region14: #{tpu_custom_call.1} parent=5 // pred_check_branch
        %85 = sbr.rel (%p83) target = $region16
      $region15: #{tpu_custom_call.1} parent=5 // pred_region
        // Predicated region
        $region17: #{tpu_custom_call.1} parent=15 // pred_check
          %p86 = pneg %p35
        $region18: #{tpu_custom_call.1} parent=15 // pred_check_branch
          %88 = sbr.rel (%p86) target = $region20
        $region19: #{tpu_custom_call.1} parent=15 // pred_region
          %s89 = sand.u32 %s25, 1
          %s90 = scalar_lea.sflag [#allocation5], %s89
          %s91 = sand.u32 %s25, 1
          %s92 = smul.addr %s91, 8
          %s93 = scalar_lea.vmem [#allocation4], %s92
          %95 = vsyncadd %s90, 0
          %s96 = smul.addr %s15, 8
          %s97 = scalar_lea.hbm %s1, %s96
          %s99 = sshll.u32 %s97, 4
          %s100 = int_to_ptr.hbm [resolvable:$true] %s99
          %s101 = sshll.u32 %s93, 4
          %s102 = int_to_ptr.vmem [resolvable:$true] %s101
          %104 = dma.hbm_to_vmem [thread:$0]  %s100, 128, %s102, %s90
        $region20: #{tpu_custom_call.1} parent=15 // pred_fallthru
          _
      $region16: #{tpu_custom_call.1} parent=5 // pred_fallthru
        _
      %p105 = scmp.le.s32.totalorder 1, %s15
      %p106 = scmp.lt.s32.totalorder %s15, 3
      %p107 = pnand %p105, %p106
      %p108 = pneg %p107
      // Predicated region
      $region21: #{tpu_custom_call.1} parent=5 // pred_check
        _
      $region22: #{tpu_custom_call.1} parent=5 // pred_check_branch
        %110 = sbr.rel (%p107) target = $region24
      $region23: #{tpu_custom_call.1} parent=5 // pred_region
        %s111 = ssub.s32 %s15, 1
        %s112 = sand.u32 %s28, 1
        %s113 = scalar_lea.sflag [#allocation5], %s112
        %s114 = sand.u32 %s28, 1
        %s115 = smul.addr %s114, 8
        %s116 = scalar_lea.vmem [#allocation4], %s115
        // Predicated region
        $region25: #{tpu_custom_call.1} parent=23 // pred_check
          %p117 = pneg %p41
        $region26: #{tpu_custom_call.1} parent=23 // pred_check_branch
          %119 = sbr.rel (%p117) target = $region28
        $region27: #{tpu_custom_call.1} parent=23 // pred_region
          %121 = dma.done %s113, 128
        $region28: #{tpu_custom_call.1} parent=23 // pred_fallthru
          _
        %s122 = sand.u32 %s28, 1
        %s123 = scalar_lea.sflag [#allocation5], %s122
        %s124 = sand.u32 %s28, 1
        %s125 = smul.addr %s124, 8
        %s126 = scalar_lea.vmem [#allocation4], %s125
        %p127 = pneg %p41
        %p128 = pneg %p38
        %p129 = pneg %p67
        %p130 = pneg %p64
        %s131 = sand.u32 %s54, 1
        %s132 = scalar_lea.sflag [#allocation6], %s131
        %s133 = sand.u32 %s54, 1
        %s134 = smul.addr %s133, 8
        %s135 = scalar_lea.vmem [#allocation7], %s134
        %v136 = vld [vmem:[%s116] sm:$0xff]
        %v137 = vlaneseq
        %v138 = vshrl.u32 %v137, 7
        %v139 = vlaneseq
        %v140 = vand.u32 %v139, 127
        %s141 = smul.u32 %s20, 1024
        %v142 = vmul.u32 %v138, 128
        %v143 = vstv %s141
        %v144 = vadd.s32 %v143, %v142
        %v145 = vadd.s32 %v144, %v140
        %s146 = sld [smem:[#allocation3]]
        %s147 = smul.u32 %s146, 2654435769
        %v148 = vstv %s147
        %v149 = vxor.u32 %v145, %v148
        %v150 = vshrl.u32 %v149, 16
        %v151 = vxor.u32 %v149, %v150
        %v152 = vmul.u32 %v151, 2146121005
        %v153 = vshrl.u32 %v152, 15
        %v154 = vxor.u32 %v152, %v153
        %v155 = vmul.u32 %v154, 2221713035
        %v156 = vshrl.u32 %v155, 16
        %v157 = vxor.u32 %v155, %v156
        %v158 = vshrl.u32 %v157, 8
        %v159 = vcvt.s32.f32 %v158
        %v160 = vmul.f32 %v159, 5.9604645e-08
        %v161 = vsub.f32 0.0, %v136
        %v162 = vmul.f32 %v161, 1.442695
        %v163 = vpow.pop %v162
        %v164 = vadd.f32 %v163, 1.0
        %v165 = vmul.f32 %v160, %v164
        %vm166 = vcmp.lt.f32.partialorder %v165, 1.0
        %v167 = vsel %vm166, 1, 0
        %v168 = vcvt.s32.f32 %v167
        %169 = vst [vmem:[%s135] sm:$0xff] %v168
        %s170 = sand.u32 %s54, 1
        %s171 = scalar_lea.sflag [#allocation6], %s170
        %s172 = sand.u32 %s54, 1
        %s173 = smul.addr %s172, 8
        %s174 = scalar_lea.vmem [#allocation7], %s173
        // Predicated region
        $region29: #{tpu_custom_call.1} parent=23 // pred_check
          %p175 = pneg %p64
        $region30: #{tpu_custom_call.1} parent=23 // pred_check_branch
          %177 = sbr.rel (%p175) target = $region32
        $region31: #{tpu_custom_call.1} parent=23 // pred_region
          %179 = vsyncadd %s171, 0
          %s180 = smul.addr %s20, 8
          %s181 = scalar_lea.hbm %s2, %s180
          %s183 = sshll.u32 %s174, 4
          %s184 = int_to_ptr.vmem [resolvable:$true] %s183
          %s185 = sshll.u32 %s181, 4
          %s186 = int_to_ptr.hbm [resolvable:$true] %s185
          %188 = dma.vmem_to_hbm [thread:$0]  %s184, 128, %s186, %s171
        $region32: #{tpu_custom_call.1} parent=23 // pred_fallthru
          _
      $region24: #{tpu_custom_call.1} parent=5 // pred_fallthru
        _
      %p189 = scmp.le.s32.totalorder 2, %s15
      // Predicated region
      $region33: #{tpu_custom_call.1} parent=5 // pred_check
        %p190 = pneg %p189
      $region34: #{tpu_custom_call.1} parent=5 // pred_check_branch
        %192 = sbr.rel (%p190) target = $region36
      $region35: #{tpu_custom_call.1} parent=5 // pred_region
        %s193 = ssub.s32 %s15, 2
        // Predicated region
        $region37: #{tpu_custom_call.1} parent=35 // pred_check
          %p194 = pneg %p70
        $region38: #{tpu_custom_call.1} parent=35 // pred_check_branch
          %196 = sbr.rel (%p194) target = $region40
        $region39: #{tpu_custom_call.1} parent=35 // pred_region
          %s197 = sand.u32 %s55, 1
          %s198 = scalar_lea.sflag [#allocation6], %s197
          %s199 = sand.u32 %s55, 1
          %s200 = smul.addr %s199, 8
          %s201 = scalar_lea.vmem [#allocation7], %s200
          %203 = dma.done %s198, 128
        $region40: #{tpu_custom_call.1} parent=35 // pred_fallthru
          _
      $region36: #{tpu_custom_call.1} parent=5 // pred_fallthru
        _
    $region6: #{tpu_custom_call.1} parent=1 // loop_footer
      %s19 = sadd.s32 1, %s15
    $region7: #{tpu_custom_call.1} parent=1 // loop_footer_branch
      %14 = sbr.rel target = $region3
    $region8: #{tpu_custom_call.1} parent=1 // loop_exit
      _
    %204 = vsyncpa [#allocation5], 1
    %s205 = scalar_lea.sflag [#allocation5], 1
    %206 = vsyncpa %s205, 1
    %207 = vsyncpa [#allocation6], 1
    %s208 = scalar_lea.sflag [#allocation6], 1
    %209 = vsyncpa %s208, 1

</llo_original>
